<compile_context>
chip_gen: v6e
topology: v6e:2x2x1
jax: 0.10.0
libtpu: 0.0.40
codegen_flags: <defaults>
</compile_context>

<pallas_src>
import functools

import jax
import jax.numpy as jnp
import numpy as np
from jax.experimental import pallas as pl
from jax.experimental.pallas import tpu as pltpu

T = 0.07          # self.T
BASE_T = 0.1      # self.base_temperature
NEG = -1.0e9      # mask value used by the reference
BMAX_INIT = -1.0e30


def _pick_tile(k, target):
    """Largest multiple of 128 that divides k and is <= target."""
    assert k % 128 == 0, "queue length must be a multiple of 128"
    tk = min(target, k)
    tk -= tk % 128
    tk = max(tk, 128)
    while k % tk != 0:
        tk -= 128
    return tk


def _compiler_params(d, b, tk, q_itemsize):
    # one queue double-buffered + labels + rough f32 intermediates + headroom
    need = (2 * d * tk * q_itemsize        # queue tile, double-buffered
            + 2 * tk * 4                   # label tile, double-buffered
            + 8 * b * tk * 4               # (B, tk) f32 intermediates in the body
            + (4 << 20))                   # misc headroom
    limit = int(min(max(need, 32 << 20), 64 << 20))   # 64 MiB cap = v7x physical
    return pltpu.CompilerParams(dimension_semantics=("arbitrary",),
                                vmem_limit_bytes=limit)


# --------------------- kernel 1: stream negatives queue ---------------------
def _neg_kernel(hf_ref, tgt_ref, q_ref, pq_ref, bmax_ref, bsum_ref, qn_ref):
    t = pl.program_id(0)

    @pl.when(t == 0)
    def _prologue():
        # q = F.normalize(hidden_features, dim=1), kept as bf16 MXU operand
        x = hf_ref[...].astype(jnp.float32)
        nrm = jnp.sqrt(jnp.sum(x * x, axis=1, keepdims=True))
        qn_ref[...] = (x / jnp.maximum(nrm, 1e-12)).astype(qn_ref.dtype)
        bmax_ref[...] = jnp.full_like(bmax_ref, BMAX_INIT)
        bsum_ref[...] = jnp.zeros_like(bsum_ref)

    # cast queue tile to bf16 AFTER the DMA (no-op if stored in bf16)
    qt = q_ref[...].astype(jnp.bfloat16)
    sim = jnp.dot(qn_ref[...], qt, preferred_element_type=jnp.float32)  # (B, tk)
    eq = tgt_ref[...] == pq_ref[...]
    base = jnp.where(eq, sim * (1.0 / T), NEG / T)       # 1/T folded into select
    tmax = jnp.max(base, axis=1, keepdims=True)
    m_old = bmax_ref[...]
    m_new = jnp.maximum(m_old, tmax)
    bsum_ref[...] = (bsum_ref[...] * jnp.exp(m_old - m_new)
                     + jnp.sum(jnp.exp(base - m_new), axis=1, keepdims=True))
    bmax_ref[...] = m_new


# --------------------- kernel 2: stream positives queue ---------------------
def _pos_kernel(hf_ref, out_ref, outk_ref, tgt_ref, bmax_ref, bsum_ref,
                cq_ref, cpq_ref, loss_ref, acc_ref,
                qn_ref, sr_ref, num_ref, cnt_ref):
    t = pl.program_id(0)
    batch = hf_ref.shape[0]
    num_class = out_ref.shape[1]

    @pl.when(t == 0)
    def _prologue():
        x = hf_ref[...].astype(jnp.float32)
        nrm = jnp.sqrt(jnp.sum(x * x, axis=1, keepdims=True))
        qn_ref[...] = (x / jnp.maximum(nrm, 1e-12)).astype(qn_ref.dtype)

        # sr = max(softmax(outputs)) = 1 / sum(exp(logits - rowmax))
        logits = out_ref[...].astype(jnp.float32)
        mx = jnp.max(logits, axis=1, keepdims=True)
        sexp = jnp.sum(jnp.exp(logits - mx), axis=1, keepdims=True)
        sr_ref[...] = 1.0 / sexp

        # accuracy = mean(argmax(outputs_k, 1) == targets)  (first-max tie-break)
        lk = outk_ref[...].astype(jnp.float32)
        col = jax.lax.broadcasted_iota(jnp.int32, lk.shape, 1)
        rmax = jnp.max(lk, axis=1, keepdims=True)
        cand = jnp.where(lk == rmax, col, jnp.int32(num_class))
        pred_k = jnp.min(cand, axis=1, keepdims=True)
        correct_k = (pred_k == tgt_ref[...]).astype(jnp.float32)
        acc_ref[...] = jnp.sum(correct_k, axis=0, keepdims=True) / jnp.float32(batch)

        num_ref[...] = jnp.zeros_like(num_ref)
        cnt_ref[...] = jnp.zeros_like(cnt_ref)

    ct = cq_ref[...].astype(jnp.bfloat16)
    sim_tp = jnp.dot(qn_ref[...], ct, preferred_element_type=jnp.float32)  # (B, tk)
    eqf = (tgt_ref[...] == cpq_ref[...]).astype(jnp.float32)
    pos = sim_tp * eqf                        # sim_matrix_tp *= eq_matrix_tp
    pos_s = pos * (1.0 / T)
    bmax = bmax_ref[...]
    bsum = bsum_ref[...]
    m = jnp.maximum(bmax, pos_s)              # row max of [pos/T, base_row]
    s = jnp.exp(pos_s - m) + bsum * jnp.exp(bmax - m)
    lse = jnp.log(s)                          # shifted logsumexp (as in reference)
    num_ref[...] += jnp.sum(eqf * (lse - pos), axis=1, keepdims=True)
    cnt_ref[...] += jnp.sum(eqf, axis=1, keepdims=True)

    @pl.when(t == pl.num_programs(0) - 1)
    def _epilogue():
        n = cnt_ref[...]
        safe_n = jnp.where(n > 0.0, n, 1.0)
        per_row = jnp.where(n > 0.0, num_ref[...] * sr_ref[...] / safe_n, 0.0)
        loss_ref[...] = ((T / BASE_T) * jnp.sum(per_row, axis=0, keepdims=True)
                         / jnp.float32(batch))


def moco_forward(hidden_features, hidden_features_k, targets, outputs, outputs_k,
                 queue, prediction_queue, correct_queue, correct_prediction_queue,
                 epoch=1, pretrain=0, full_flag=True, tile_k=8192):
    assert epoch >= pretrain and full_flag, "only the contrastive-loss branch is implemented"
    # hidden_features_k only feeds _dequeue_and_enqueue (ring-buffer update).
    # TODO(synk): _dequeue_and_enqueue (dynamic-size boolean partition + circular
    # in-place buffer scatter) and the DDP all_gather/shuffle helpers have no
    # clean single-kernel Pallas equivalent and are not implemented.
    del hidden_features_k

    B, D = hidden_features.shape
    C = outputs.shape[1]
    K2 = queue.shape[1]
    K = correct_queue.shape[1]

    tk2 = _pick_tile(K2, tile_k)          # negatives tile width
    tkc = _pick_tile(K, tile_k)           # positives tile width
    n2 = K2 // tk2
    nc = K // tkc

    # labels: pass through at stored dtype where possible (reshape is free)
    tgt2 = targets.reshape(B, 1)
    if tgt2.dtype != jnp.int32:
        tgt2 = tgt2.astype(jnp.int32)
    pq2 = prediction_queue.reshape(1, K2)
    if pq2.dtype != jnp.int32:
        pq2 = pq2.astype(jnp.int32)
    cpq2 = correct_prediction_queue.reshape(1, K)
    if cpq2.dtype != jnp.int32:
        cpq2 = cpq2.astype(jnp.int32)

    q_item = jnp.dtype(queue.dtype).itemsize
    cq_item = jnp.dtype(correct_queue.dtype).itemsize

    # ---- pass 1: negatives queue -> per-row (bmax, bsum) ----
    bmax, bsum = pl.pallas_call(
        _neg_kernel,
        out_shape=(jax.ShapeDtypeStruct((B, 1), jnp.float32),
                   jax.ShapeDtypeStruct((B, 1), jnp.float32)),
        grid=(n2,),
        in_specs=[
            pl.BlockSpec((B, D), lambda t: (0, 0)),         # hidden_features
            pl.BlockSpec((B, 1), lambda t: (0, 0)),         # targets
            pl.BlockSpec((D, tk2), lambda t: (0, t)),       # queue (streamed)
            pl.BlockSpec((1, tk2), lambda t: (0, t)),       # prediction_queue
        ],
        out_specs=(pl.BlockSpec((B, 1), lambda t: (0, 0)),
                   pl.BlockSpec((B, 1), lambda t: (0, 0))),
        scratch_shapes=[pltpu.VMEM((B, D), jnp.bfloat16)],  # normalized q
        compiler_params=_compiler_params(D, B, tk2, q_item),
    )(hidden_features, tgt2, queue, pq2)

    # ---- pass 2: positives queue -> loss, plus sr / accuracy prologue ----
    loss, acc = pl.pallas_call(
        _pos_kernel,
        out_shape=(jax.ShapeDtypeStruct((1, 1), jnp.float32),   # scaled InfoNCE loss
                   jax.ShapeDtypeStruct((1, 1), jnp.float32)),  # key-branch accuracy
        grid=(nc,),
        in_specs=[
            pl.BlockSpec((B, D), lambda t: (0, 0)),         # hidden_features
            pl.BlockSpec((B, C), lambda t: (0, 0)),         # outputs
            pl.BlockSpec((B, C), lambda t: (0, 0)),         # outputs_k
            pl.BlockSpec((B, 1), lambda t: (0, 0)),         # targets
            pl.BlockSpec((B, 1), lambda t: (0, 0)),         # bmax (from pass 1)
            pl.BlockSpec((B, 1), lambda t: (0, 0)),         # bsum (from pass 1)
            pl.BlockSpec((D, tkc), lambda t: (0, t)),       # correct_queue (streamed)
            pl.BlockSpec((1, tkc), lambda t: (0, t)),       # correct_prediction_queue
        ],
        out_specs=(pl.BlockSpec((1, 1), lambda t: (0, 0)),
                   pl.BlockSpec((1, 1), lambda t: (0, 0))),
        scratch_shapes=[
            pltpu.VMEM((B, D), jnp.bfloat16),   # normalized q
            pltpu.VMEM((B, 1), jnp.float32),    # sr
            pltpu.VMEM((B, 1), jnp.float32),    # per-row loss numerator
            pltpu.VMEM((B, 1), jnp.float32),    # per-row positive counts
        ],
        compiler_params=_compiler_params(D, B, tkc, cq_item),
    )(hidden_features, outputs, outputs_k, tgt2, bmax, bsum, correct_queue, cpq2)

    full_k1 = False
    full_k2 = False
    return full_k1, full_k2, acc[0, 0], loss[0, 0]


# ------------------------- reference / self-test -------------------------

def _bf16_round(x):
    return np.asarray(jnp.asarray(np.asarray(x, np.float32), jnp.bfloat16).astype(jnp.float32))


def _numpy_reference(hf, tgt, out, outk, queue, pq, cq, cpq):
    hf, out, outk = (np.asarray(a, np.float32) for a in (hf, out, outk))
    tgt, pq, cpq = (np.asarray(a, np.int64) for a in (tgt, pq, cpq))

    q = hf / np.maximum(np.linalg.norm(hf, axis=1, keepdims=True), 1e-12)
    # mimic the kernel's bf16-fed MXU (f32 accumulation)
    qb = _bf16_round(q)
    queue_b = _bf16_round(queue)
    cq_b = _bf16_round(cq)

    pred_k = outk.argmax(1)
    acc = (pred_k == tgt).sum() / tgt.shape[0]

    e = np.exp(out - out.max(1, keepdims=True))
    sm = e / e.sum(1, keepdims=True)
    sr = sm.max(1)

    sim = qb @ queue_b
    eq = tgt[:, None] == pq[None, :]
    sim = sim * eq + (~eq).astype(np.float32) * NEG

    sim_tp = qb @ cq_b
    eq_tp = tgt[:, None] == cpq[None, :]
    sim_tp = sim_tp * eq_tp
    pos = sim_tp[eq_tp]
    n = eq_tp.sum(1)
    exp_den = np.repeat(n / sr, n)
    exp_sim = np.repeat(sim, n, axis=0)
    logits = np.concatenate([pos[:, None], exp_sim], axis=1) / T
    logits = logits - logits.max(1, keepdims=True)
    lse = np.log(np.exp(logits).sum(1))
    loss = ((lse - pos) / exp_den).sum() / q.shape[0]
    return float(acc), float(T / BASE_T * loss)


if __name__ == "__main__":
    B, D, C = 8, 128, 10      # batch, feature dim, num_class
    K = K2 = 256              # small synthetic queue sizes

    key = jax.random.PRNGKey(0)
    ks = jax.random.split(key, 9)

    hidden_features = jax.random.normal(ks[0], (B, D), jnp.float32)
    hidden_features_k = jax.random.normal(ks[1], (B, D), jnp.float32)
    targets = jax.random.randint(ks[2], (B,), 0, C, jnp.int32)
    outputs = jax.random.normal(ks[3], (B, C), jnp.float32)
    outputs_k = jax.random.normal(ks[4], (B, C), jnp.float32)

    queue = jax.random.normal(ks[5], (D, K2), jnp.float32)
    queue = queue / jnp.linalg.norm(queue, axis=0, keepdims=True)
    prediction_queue = jax.random.randint(ks[6], (K2,), 0, C, jnp.int32)
    correct_queue = jax.random.normal(ks[7], (D, K), jnp.float32)
    correct_queue = correct_queue / jnp.linalg.norm(correct_queue, axis=0, keepdims=True)
    correct_prediction_queue = jax.random.randint(ks[8], (K,), 0, C, jnp.int32)

    ref_acc, ref_loss = _numpy_reference(
        hidden_features, targets, outputs, outputs_k,
        queue, prediction_queue, correct_queue, correct_prediction_queue)

    # persistent bf16 queue storage (the recommended production layout)
    queue_bf16 = queue.astype(jnp.bfloat16)
    correct_queue_bf16 = correct_queue.astype(jnp.bfloat16)

    cases = [
        (queue, correct_queue, 8192),          # f32 storage, single tile (in-kernel bf16 cast)
        (queue, correct_queue, 128),           # f32 storage, streamed multi-tile path
        (queue_bf16, correct_queue_bf16, 128),  # persistent bf16 storage, streamed path
    ]
    for q_in, cq_in, tk in cases:
        full_k1, full_k2, acc, loss = moco_forward(
            hidden_features, hidden_features_k, targets, outputs, outputs_k,
            q_in, prediction_queue, cq_in, correct_prediction_queue,
            epoch=1, pretrain=0, full_flag=True, tile_k=tk)
        jax.block_until_ready((acc, loss))

        np.testing.assert_allclose(float(acc), ref_acc, rtol=1e-6, atol=1e-6)
        np.testing.assert_allclose(float(loss), ref_loss, rtol=2e-3, atol=2e-3)

    print("KERNEL_OK")
</pallas_src>

<mosaic_0001>
module attributes {stable_mosaic.version = 11 : i64} {
  func.func @_neg_kernel(%arg0: i32, %arg1: memref<8x128xf32, #tpu.memory_space<vmem>>, %arg2: memref<8x1xi32, #tpu.memory_space<vmem>>, %arg3: memref<128x256xf32, #tpu.memory_space<vmem>>, %arg4: memref<1x256xi32, #tpu.memory_space<vmem>>, %arg5: memref<8x1xf32, #tpu.memory_space<vmem>>, %arg6: memref<8x1xf32, #tpu.memory_space<vmem>>, %arg7: memref<8x128xbf16, #tpu.memory_space<vmem>>) attributes {dimension_semantics = [#tpu.dimension_semantics<arbitrary>], iteration_bounds = array<i64: 1>, scalar_prefetch = 0 : i64, scratch_operands = 1 : i64, tpu.core_type = #tpu.core_type<tc>, window_params = [{pipeline_mode = #tpu.pipeline_mode<synchronous>, transform_indices = @transform_0, window_bounds = array<i64: 8, 128>}, {pipeline_mode = #tpu.pipeline_mode<synchronous>, transform_indices = @transform_1, window_bounds = array<i64: 8, 1>}, {transform_indices = @transform_2, window_bounds = array<i64: 128, 256>}, {transform_indices = @transform_3, window_bounds = array<i64: 1, 256>}, {pipeline_mode = #tpu.pipeline_mode<synchronous>, transform_indices = @transform_4, window_bounds = array<i64: 8, 1>}, {pipeline_mode = #tpu.pipeline_mode<synchronous>, transform_indices = @transform_5, window_bounds = array<i64: 8, 1>}]} {
    %c0_i32 = arith.constant 0 : i32
    %0 = arith.cmpi eq, %arg0, %c0_i32 : i32
    %1 = arith.extui %0 : i1 to i32
    %c0_i32_0 = arith.constant 0 : i32
    %2 = arith.cmpi ne, %1, %c0_i32_0 : i32
    scf.if %2 {
      %c0_20 = arith.constant 0 : index
      %c0_21 = arith.constant 0 : index
      %32 = vector.load %arg1[%c0_20, %c0_21] : memref<8x128xf32, #tpu.memory_space<vmem>>, vector<8x128xf32>
      %33 = arith.mulf %32, %32 : vector<8x128xf32>
      %cst_22 = arith.constant dense<0.000000e+00> : vector<8xf32>
      %34 = vector.multi_reduction <add>, %33, %cst_22 [1] : vector<8x128xf32> to vector<8xf32>
      %35 = vector.shape_cast %34 : vector<8xf32> to vector<8x1xf32>
      %36 = math.sqrt %35 : vector<8x1xf32>
      %cst_23 = arith.constant 9.99999996E-13 : f32
      %37 = vector.broadcast %cst_23 : f32 to vector<8x1xf32>
      %38 = arith.maximumf %36, %37 : vector<8x1xf32>
      %39 = vector.broadcast %38 : vector<8x1xf32> to vector<8x128xf32>
      %40 = arith.divf %32, %39 : vector<8x128xf32>
      %41 = arith.truncf %40 : vector<8x128xf32> to vector<8x128xbf16>
      %c0_24 = arith.constant 0 : index
      %c0_25 = arith.constant 0 : index
      %42 = vector.load %arg7[%c0_24, %c0_25] : memref<8x128xbf16, #tpu.memory_space<vmem>>, vector<8x128xbf16>
      tpu.vector_store %arg7[%c0_24, %c0_25], %41 {strides = array<i32>} : memref<8x128xbf16, #tpu.memory_space<vmem>>, vector<8x128xbf16>,
      %cst_26 = arith.constant -1.000000e+30 : f32
      %43 = vector.broadcast %cst_26 : f32 to vector<8x1xf32>
      %c0_27 = arith.constant 0 : index
      %c0_28 = arith.constant 0 : index
      %44 = vector.load %arg5[%c0_27, %c0_28] : memref<8x1xf32, #tpu.memory_space<vmem>>, vector<8x1xf32>
      tpu.vector_store %arg5[%c0_27, %c0_28], %43 {strides = array<i32>} : memref<8x1xf32, #tpu.memory_space<vmem>>, vector<8x1xf32>,
      %cst_29 = arith.constant 0.000000e+00 : f32
      %45 = vector.broadcast %cst_29 : f32 to vector<8x1xf32>
      %c0_30 = arith.constant 0 : index
      %c0_31 = arith.constant 0 : index
      %46 = vector.load %arg6[%c0_30, %c0_31] : memref<8x1xf32, #tpu.memory_space<vmem>>, vector<8x1xf32>
      tpu.vector_store %arg6[%c0_30, %c0_31], %45 {strides = array<i32>} : memref<8x1xf32, #tpu.memory_space<vmem>>, vector<8x1xf32>,
    } else {
    }
    %c0 = arith.constant 0 : index
    %c0_1 = arith.constant 0 : index
    %3 = vector.load %arg3[%c0, %c0_1] : memref<128x256xf32, #tpu.memory_space<vmem>>, vector<128x256xf32>
    %4 = arith.truncf %3 : vector<128x256xf32> to vector<128x256xbf16>
    %c0_2 = arith.constant 0 : index
    %c0_3 = arith.constant 0 : index
    %5 = vector.load %arg7[%c0_2, %c0_3] : memref<8x128xbf16, #tpu.memory_space<vmem>>, vector<8x128xbf16>
    %cst = arith.constant dense<0.000000e+00> : vector<8x256xf32>
    %6 = tpu.matmul %5, %4, %cst {dimension_numbers = #tpu.dot_dimension_numbers<[1], [0], [0], [1], [0, 0, 1, 1], [], []>} : vector<8x128xbf16>, vector<128x256xbf16>, vector<8x256xf32> -> vector<8x256xf32>
    %c0_4 = arith.constant 0 : index
    %c0_5 = arith.constant 0 : index
    %7 = vector.load %arg2[%c0_4, %c0_5] : memref<8x1xi32, #tpu.memory_space<vmem>>, vector<8x1xi32>
    %c0_6 = arith.constant 0 : index
    %c0_7 = arith.constant 0 : index
    %8 = vector.load %arg4[%c0_6, %c0_7] : memref<1x256xi32, #tpu.memory_space<vmem>>, vector<1x256xi32>
    %9 = vector.broadcast %7 : vector<8x1xi32> to vector<8x256xi32>
    %10 = vector.broadcast %8 : vector<1x256xi32> to vector<8x256xi32>
    %11 = arith.cmpi eq, %9, %10 : vector<8x256xi32>
    %cst_8 = arith.constant 14.2857141 : f32
    %12 = vector.broadcast %cst_8 : f32 to vector<8x256xf32>
    %13 = arith.mulf %6, %12 : vector<8x256xf32>
    %cst_9 = arith.constant -1.42857144E+10 : f32
    %14 = vector.broadcast %cst_9 : f32 to vector<8x256xf32>
    %15 = arith.select %11, %13, %14 : vector<8x256xi1>, vector<8x256xf32>
    %cst_10 = arith.constant dense<0xFF800000> : vector<8xf32>
    %16 = vector.multi_reduction <maximumf>, %15, %cst_10 [1] : vector<8x256xf32> to vector<8xf32>
    %17 = vector.shape_cast %16 : vector<8xf32> to vector<8x1xf32>
    %c0_11 = arith.constant 0 : index
    %c0_12 = arith.constant 0 : index
    %18 = vector.load %arg5[%c0_11, %c0_12] : memref<8x1xf32, #tpu.memory_space<vmem>>, vector<8x1xf32>
    %19 = arith.maximumf %18, %17 : vector<8x1xf32>
    %c0_13 = arith.constant 0 : index
    %c0_14 = arith.constant 0 : index
    %20 = vector.load %arg6[%c0_13, %c0_14] : memref<8x1xf32, #tpu.memory_space<vmem>>, vector<8x1xf32>
    %21 = arith.subf %18, %19 : vector<8x1xf32>
    %22 = math.exp %21 : vector<8x1xf32>
    %23 = arith.mulf %20, %22 : vector<8x1xf32>
    %24 = vector.broadcast %19 : vector<8x1xf32> to vector<8x256xf32>
    %25 = arith.subf %15, %24 : vector<8x256xf32>
    %26 = math.exp %25 : vector<8x256xf32>
    %cst_15 = arith.constant dense<0.000000e+00> : vector<8xf32>
    %27 = vector.multi_reduction <add>, %26, %cst_15 [1] : vector<8x256xf32> to vector<8xf32>
    %28 = vector.shape_cast %27 : vector<8xf32> to vector<8x1xf32>
    %29 = arith.addf %23, %28 : vector<8x1xf32>
    %c0_16 = arith.constant 0 : index
    %c0_17 = arith.constant 0 : index
    %30 = vector.load %arg6[%c0_16, %c0_17] : memref<8x1xf32, #tpu.memory_space<vmem>>, vector<8x1xf32>
    tpu.vector_store %arg6[%c0_16, %c0_17], %29 {strides = array<i32>} : memref<8x1xf32, #tpu.memory_space<vmem>>, vector<8x1xf32>,
    %c0_18 = arith.constant 0 : index
    %c0_19 = arith.constant 0 : index
    %31 = vector.load %arg5[%c0_18, %c0_19] : memref<8x1xf32, #tpu.memory_space<vmem>>, vector<8x1xf32>
    tpu.vector_store %arg5[%c0_18, %c0_19], %19 {strides = array<i32>} : memref<8x1xf32, #tpu.memory_space<vmem>>, vector<8x1xf32>,
    return
  }
  func.func @transform_0(%arg0: i32) -> (i32, i32) {
    %c0_i32 = arith.constant 0 : i32
    %c0_i32_0 = arith.constant 0 : i32
    %c0_i32_1 = arith.constant 0 : i32
    return %c0_i32, %c0_i32_0 : i32, i32
  }
  func.func @transform_1(%arg0: i32) -> (i32, i32) {
    %c0_i32 = arith.constant 0 : i32
    %c0_i32_0 = arith.constant 0 : i32
    %c0_i32_1 = arith.constant 0 : i32
    return %c0_i32, %c0_i32_0 : i32, i32
  }
  func.func @transform_2(%arg0: i32) -> (i32, i32) {
    %c0_i32 = arith.constant 0 : i32
    %c0_i32_0 = arith.constant 0 : i32
    return %c0_i32, %arg0 : i32, i32
  }
  func.func @transform_3(%arg0: i32) -> (i32, i32) {
    %c0_i32 = arith.constant 0 : i32
    %c0_i32_0 = arith.constant 0 : i32
    return %c0_i32, %arg0 : i32, i32
  }
  func.func @transform_4(%arg0: i32) -> (i32, i32) {
    %c0_i32 = arith.constant 0 : i32
    %c0_i32_0 = arith.constant 0 : i32
    %c0_i32_1 = arith.constant 0 : i32
    return %c0_i32, %c0_i32_0 : i32, i32
  }
  func.func @transform_5(%arg0: i32) -> (i32, i32) {
    %c0_i32 = arith.constant 0 : i32
    %c0_i32_0 = arith.constant 0 : i32
    %c0_i32_1 = arith.constant 0 : i32
    return %c0_i32, %c0_i32_0 : i32, i32
  }
}

</mosaic_0001>

<llo_original>
// kernel: tpu_custom_call.1
$region0: #{tpu_custom_call.1}
  #allocation0 [shape = 'u32[]', space=smem, size = 0x4, offset = 0x4, fixed_abs, tag = 'smem constant byte address 0x4 - core index']
  #allocation1 [shape = 'u32[144,128]{1,0:T(1,128)}', space=vmem, size = 0x12000, scoped, tag = 'internal scratch']
  #allocation2 [shape = 'bf16[8,128]{1,0:T(8,128)(2,1)}', space=vmem, size = 0x800, scoped, tag = 'scratch operand']
  %s0 = inlined_call_operand.vmem [shape: f32[8,128], index: 0, kind: input, shape index: {}]
  %s1 = inlined_call_operand.vmem [shape: s32[8,1], index: 1, kind: input, shape index: {}]
  %s2 = inlined_call_operand.hbm [shape: f32[128,256], index: 2, kind: input, shape index: {}]
  %s3 = inlined_call_operand.vmem [shape: s32[1,256], index: 3, kind: input, shape index: {}]
  %s4 = inlined_call_operand.vmem [shape: f32[8,1], index: 4, kind: output, shape index: {0}]
  %s5 = inlined_call_operand.vmem [shape: f32[8,1], index: 5, kind: output, shape index: {1}]
  %6 = xla_tuple %s4, %s5
  %s7 = sld [smem:[#allocation0]]
  $region42: #{tpu_custom_call.1} parent=0
    _
  %s9 = ssub.s32 1, %s7
  %s10 = scalar_select 0, %s9, %s7
  $region1: #{tpu_custom_call.1} parent=0
    #allocation3 [shape = 'u8[131072]{0}', space=vmem, size = 0x20000, scoped, tag = 'input window, operand 2, single buffered']
    #allocation4 [shape = 's32[1]{0}', space=sflag, size = 0x4, scoped, tag = 'scoped memory for tpu_custom_call.1']
    %11 = vsyncpa [#allocation4], 0
    // Predicated region
    $region2: #{tpu_custom_call.1} parent=1 // pred_check
      _
    $region3: #{tpu_custom_call.1} parent=1 // pred_check_branch
      %13 = sbr.rel (0) target = $region5
    $region4: #{tpu_custom_call.1} parent=1 // pred_region
      _
    $region5: #{tpu_custom_call.1} parent=1 // pred_fallthru
      _
    // Predicated region
    $region6: #{tpu_custom_call.1} parent=1 // pred_check
      _
    $region7: #{tpu_custom_call.1} parent=1 // pred_check_branch
      %15 = sbr.rel (0) target = $region9
    $region8: #{tpu_custom_call.1} parent=1 // pred_region
      _
    $region9: #{tpu_custom_call.1} parent=1 // pred_fallthru
      _
    // Predicated region
    $region10: #{tpu_custom_call.1} parent=1 // pred_check
      _
    $region11: #{tpu_custom_call.1} parent=1 // pred_check_branch
      %17 = sbr.rel (0) target = $region13
    $region12: #{tpu_custom_call.1} parent=1 // pred_region
      %s19 = ssub.s32 4096, 4096
      %20 = vsyncadd [#allocation4], %s19
      %s21 = sshll.u32 [#allocation3], 4
      %s22 = int_to_ptr.vmem [resolvable:$true] %s21
      %27 = dma.hbm_to_vmem [thread:$0]  %s2, 4096, %s22, [#allocation4], 256, 256, 16
    $region13: #{tpu_custom_call.1} parent=1 // pred_fallthru
      _
    // Predicated region
    $region14: #{tpu_custom_call.1} parent=1 // pred_check
      _
    $region15: #{tpu_custom_call.1} parent=1 // pred_check_branch
      %29 = sbr.rel (0) target = $region17
    $region16: #{tpu_custom_call.1} parent=1 // pred_region
      _
    $region17: #{tpu_custom_call.1} parent=1 // pred_fallthru
      _
    // Predicated region
    $region18: #{tpu_custom_call.1} parent=1 // pred_check
      _
    $region19: #{tpu_custom_call.1} parent=1 // pred_check_branch
      %31 = sbr.rel (0) target = $region21
    $region20: #{tpu_custom_call.1} parent=1 // pred_region
      %32 = dma.done [#allocation4], 4096
    $region21: #{tpu_custom_call.1} parent=1 // pred_fallthru
      _
    %p34 = scmp.eq.s32.totalorder 0, 0
    // Predicated region
    $region22: #{tpu_custom_call.1} parent=1 // pred_check
      %p35 = pneg %p34
    $region23: #{tpu_custom_call.1} parent=1 // pred_check_branch
      %37 = sbr.rel (%p35) target = $region25
    $region24: #{tpu_custom_call.1} parent=1 // pred_region
      %v38 = vld [vmem:[%s0] sm:$0xff]
      %v39 = vmul.f32 %v38, %v38
      %40 = vadd.xlane.f32.xlu0 %v39
      %v41 = vpop.xlane.xlu0 %40
      %v42 = vrsqrt.pop %v41
      %v43 = vmul.f32 %v41, %v42
      %vm44 = vcmp.eq.f32.partialorder %v41, inf
      %v45 = vsel %vm44, %v41, %v43
      %vm46 = vcmp.eq.f32.partialorder %v41, 0.0
      %v47 = vand.u32 %v41, 2147483648
      %v48 = vsel %vm46, %v47, %v45
      %v49 = vmax.f32 %v48, 1e-12
      %v50 = vrcp.pop %v49
      %v51 = vmul.f32 %v38, %v50
      %v52 = vpack.c.bf16 %v51, %v51
      %53 = vst [vmem:[#allocation2] sm:$0xf] %v52
      %vm54 = vcmask 7168
      %55 = vst.msk [vmem:[%s4] sm:$0xff] %vm54, -1e+30
      %56 = vst.msk [vmem:[%s5] sm:$0xff] %vm54, 0.0
    $region25: #{tpu_custom_call.1} parent=1 // pred_fallthru
      _
    %v57 = vld [vmem:[#allocation3] sm:$0xff]
    %v58 = vld [vmem:[#allocation3 + $0x8] sm:$0xff]
    %v59 = vld [vmem:[#allocation3 + $0x10] sm:$0xff]
    %v60 = vld [vmem:[#allocation3 + $0x18] sm:$0xff]
    %v61 = vld [vmem:[#allocation3 + $0x20] sm:$0xff]
    %v62 = vld [vmem:[#allocation3 + $0x28] sm:$0xff]
    %v63 = vld [vmem:[#allocation3 + $0x30] sm:$0xff]
    %v64 = vld [vmem:[#allocation3 + $0x38] sm:$0xff]
    %v65 = vld [vmem:[#allocation3 + $0x40] sm:$0xff]
    %v66 = vld [vmem:[#allocation3 + $0x48] sm:$0xff]
    %v67 = vld [vmem:[#allocation3 + $0x50] sm:$0xff]
    %v68 = vld [vmem:[#allocation3 + $0x58] sm:$0xff]
    %v69 = vld [vmem:[#allocation3 + $0x60] sm:$0xff]
    %v70 = vld [vmem:[#allocation3 + $0x68] sm:$0xff]
    %v71 = vld [vmem:[#allocation3 + $0x70] sm:$0xff]
    %v72 = vld [vmem:[#allocation3 + $0x78] sm:$0xff]
    %v73 = vld [vmem:[#allocation3 + $0x80] sm:$0xff]
    %v74 = vld [vmem:[#allocation3 + $0x88] sm:$0xff]
    %v75 = vld [vmem:[#allocation3 + $0x90] sm:$0xff]
    %v76 = vld [vmem:[#allocation3 + $0x98] sm:$0xff]
    %v77 = vld [vmem:[#allocation3 + $0xa0] sm:$0xff]
    %v78 = vld [vmem:[#allocation3 + $0xa8] sm:$0xff]
    %v79 = vld [vmem:[#allocation3 + $0xb0] sm:$0xff]
    %v80 = vld [vmem:[#allocation3 + $0xb8] sm:$0xff]
    %v81 = vld [vmem:[#allocation3 + $0xc0] sm:$0xff]
    %v82 = vld [vmem:[#allocation3 + $0xc8] sm:$0xff]
    %v83 = vld [vmem:[#allocation3 + $0xd0] sm:$0xff]
    %v84 = vld [vmem:[#allocation3 + $0xd8] sm:$0xff]
    %v85 = vld [vmem:[#allocation3 + $0xe0] sm:$0xff]
    %v86 = vld [vmem:[#allocation3 + $0xe8] sm:$0xff]
    %v87 = vld [vmem:[#allocation3 + $0xf0] sm:$0xff]
    %v88 = vld [vmem:[#allocation3 + $0xf8] sm:$0xff]
    %v89 = vpack.c.bf16 %v59, %v57
    %v90 = vpack.c.bf16 %v60, %v58
    %v91 = vpack.c.bf16 %v63, %v61
    %v92 = vpack.c.bf16 %v64, %v62
    %v93 = vpack.c.bf16 %v67, %v65
    %v94 = vpack.c.bf16 %v68, %v66
    %v95 = vpack.c.bf16 %v71, %v69
    %v96 = vpack.c.bf16 %v72, %v70
    %v97 = vpack.c.bf16 %v75, %v73
    %v98 = vpack.c.bf16 %v76, %v74
    %v99 = vpack.c.bf16 %v79, %v77
    %v100 = vpack.c.bf16 %v80, %v78
    %v101 = vpack.c.bf16 %v83, %v81
    %v102 = vpack.c.bf16 %v84, %v82
    %v103 = vpack.c.bf16 %v87, %v85
    %v104 = vpack.c.bf16 %v88, %v86
    %v105 = vld [vmem:[#allocation2] sm:$0xf]
    %106 = vmatprep.subr.bf16.mxu0 %v104
    %107 = vmatpush1.bf16.msra.mxu0 %v103
    %108 = vmatprep.subr.bf16.mxu0 %v102
    %109 = vmatpush1.bf16.msra.mxu0 %v101
    %110 = vmatprep.subr.bf16.mxu0 %v100
    %111 = vmatpush1.bf16.msra.mxu0 %v99
    %112 = vmatprep.subr.bf16.mxu0 %v98
    %113 = vmatpush1.bf16.msra.mxu0 %v97
    %114 = vmatprep.subr.bf16.mxu0 %v96
    %115 = vmatpush1.bf16.msra.mxu0 %v95
    %116 = vmatprep.subr.bf16.mxu0 %v94
    %117 = vmatpush1.bf16.msra.mxu0 %v93
    %118 = vmatprep.subr.bf16.mxu0 %v92
    %119 = vmatpush1.bf16.msra.mxu0 %v91
    %120 = vmatprep.subr.bf16.mxu0 %v90
    %121 = vmatpush1.bf16.msra.mxu0 %v89
    %122 = vmatprep.subr.bf16.mxu0 0
    %123 = vmatpush2.bf16.msra.mxu0 0
    %124 = vmatprep.subr.bf16.mxu0 0
    %125 = vmatpush2.bf16.msra.mxu0 0
    %126 = vmatprep.subr.bf16.mxu0 0
    %127 = vmatpush2.bf16.msra.mxu0 0
    %128 = vmatprep.subr.bf16.mxu0 0
    %129 = vmatpush2.bf16.msra.mxu0 0
    %130 = vmatprep.subr.bf16.mxu0 0
    %131 = vmatpush2.bf16.msra.mxu0 0
    %132 = vmatprep.subr.bf16.mxu0 0
    %133 = vmatpush2.bf16.msra.mxu0 0
    %134 = vmatprep.subr.bf16.mxu0 0
    %135 = vmatpush2.bf16.msra.mxu0 0
    %136 = vmatprep.subr.bf16.mxu0 0
    %137 = vmatpush2.bf16.msra.mxu0 0
    %138 = vmatprep.mubr.bf16.mxu0 0
    %139 = vmatmul.mubr.bf16.gmra.mxu0 %v105
    %v140 = vpop.f32.mrf.mxu0
    %v141 = vadd.f32 0.0, %v140
    %v142 = vpop.f32.mrf.mxu0
    %v143 = vadd.f32 0.0, %v142
    %v144 = vpop.f32.mrf.mxu0
    %v145 = vpop.f32.mrf.mxu0
    %146 = vdwg.mxu0
    %v147 = vld [vmem:[%s1] sm:$0xff]
    %v148 = vld [vmem:[%s3] sm:$0x3]
    %149 = vset.pattern.permute.xlu0 0
    %150 = vperm.xlu0 %149, %v147
    %v151 = vpop.permute.xlu0 %150
    %v152 = vlaneseq
    %v153 = vshrl.u32 %v152, 7
    %v154 = vsub.s32 0, %v153
    %v155 = vrot.slane %v148, %v154
    %v156 = vlaneseq
    %v157 = vshrl.u32 %v156, 7
    %v158 = vsub.s32 1, %v157
    %v159 = vrot.slane %v148, %v158
    %vm160 = vcmp.eq.s32.totalorder %v151, %v155
    %vm161 = vcmp.eq.s32.totalorder %v151, %v159
    %v162 = vmul.f32 %v141, 14.285714
    %v163 = vmul.f32 %v143, 14.285714
    %v164 = vsel %vm160, %v162, -1.4285714e+10
    %v165 = vsel %vm161, %v163, -1.4285714e+10
    %v166 = vmax.f32 %v164, %v165
    %167 = vmax.xlane.f32.xlu0 %v166
    %v168 = vpop.xlane.xlu0 %167
    %v169 = vld [vmem:[%s4] sm:$0xff]
    %v170 = vmax.f32 %v169, %v168
    %v171 = vld [vmem:[%s5] sm:$0xff]
    %v172 = vsub.f32 %v169, %v170
    %v173 = vmul.f32 %v172, 1.442695
    %v174 = vpow.pop %v173
    %v175 = vmul.f32 %v171, %v174
    %177 = vset.pattern.permute.xlu0 0
    %178 = vperm.xlu0 %177, %v170
    %v179 = vpop.permute.xlu0 %178
    %v181 = vsub.f32 %v164, %v179
    %v182 = vsub.f32 %v165, %v179
    %v183 = vmul.f32 %v181, 1.442695
    %v184 = vpow.pop %v183
    %v185 = vmul.f32 %v182, 1.442695
    %v186 = vpow.pop %v185
    %v187 = vadd.f32 %v184, %v186
    %188 = vadd.xlane.f32.xlu0 %v187
    %v189 = vpop.xlane.xlu0 %188
    %v190 = vadd.f32 %v175, %v189
    %vm191 = vcmask 7168
    %192 = vst.msk [vmem:[%s5] sm:$0xff] %vm191, %v190
    %193 = vst.msk [vmem:[%s4] sm:$0xff] %vm191, %v170
    // Predicated region
    $region26: #{tpu_custom_call.1} parent=1 // pred_check
      _
    $region27: #{tpu_custom_call.1} parent=1 // pred_check_branch
      %195 = sbr.rel (0) target = $region29
    $region28: #{tpu_custom_call.1} parent=1 // pred_region
      _
    $region29: #{tpu_custom_call.1} parent=1 // pred_fallthru
      _
    // Predicated region
    $region30: #{tpu_custom_call.1} parent=1 // pred_check
      _
    $region31: #{tpu_custom_call.1} parent=1 // pred_check_branch
      %197 = sbr.rel (0) target = $region33
    $region32: #{tpu_custom_call.1} parent=1 // pred_region
      _
    $region33: #{tpu_custom_call.1} parent=1 // pred_fallthru
      _
    // Predicated region
    $region34: #{tpu_custom_call.1} parent=1 // pred_check
      _
    $region35: #{tpu_custom_call.1} parent=1 // pred_check_branch
      %199 = sbr.rel (0) target = $region37
    $region36: #{tpu_custom_call.1} parent=1 // pred_region
      _
    $region37: #{tpu_custom_call.1} parent=1 // pred_fallthru
      _
    // Predicated region
    $region38: #{tpu_custom_call.1} parent=1 // pred_check
      _
    $region39: #{tpu_custom_call.1} parent=1 // pred_check_branch
      %201 = sbr.rel (0) target = $region41
    $region40: #{tpu_custom_call.1} parent=1 // pred_region
      _
    $region41: #{tpu_custom_call.1} parent=1 // pred_fallthru
      _
    %202 = vsyncpa [#allocation4], 1

</llo_original>
